<compile_context>
chip_gen: v5e
topology: v5e:2x2
jax: 0.10.0
libtpu: 0.0.40
codegen_flags: <defaults>
</compile_context>

<pallas_src>
import numpy as np
import jax
import jax.numpy as jnp
from jax.experimental import pallas as pl
from jax.experimental.pallas import tpu as pltpu

_LANES = 128                      # vreg lane width
_TILE_BYTES = 2 * 1024 * 1024     # per-input-tile budget; in+out double-buffered ~8 MiB


def _cdiv(a, b):
    return -(-a // b)


def _round_up(a, b):
    return _cdiv(a, b) * b


def _sublane_multiple(dtype):
    # f32 -> 8, bf16/f16 -> 16, int8 -> 32 (sub-32-bit dtypes pack along sublanes).
    itemsize = jnp.dtype(dtype).itemsize
    return 8 * max(1, 4 // itemsize)


def _choose_blocking(rows, sub, max_block_rows):
    """Pick (block_rows, num_blocks, padded_rows).

    Prefers an exact partition (no padded rows) and >= 2 blocks when rows allow
    it so v7x's two TensorCores both get work; otherwise pads rows up to a
    whole number of equal, sublane-aligned blocks."""
    min_blocks = 2 if rows >= 2 * sub else 1
    nb0 = max(min_blocks, _cdiv(rows, max_block_rows))
    hi = min(nb0 + 1024, _cdiv(rows, sub))
    for nb in range(nb0, hi + 1):
        if rows % nb:
            continue
        br = rows // nb
        if br % sub == 0 and br <= max_block_rows:
            return br, nb, rows
    nb = max(min_blocks, _cdiv(rows, max_block_rows))
    br = _round_up(_cdiv(rows, nb), sub)
    return br, nb, nb * br


# ----------------------------- Pallas kernel ------------------------------ #
def _mask_kernel(thr_ref, loss_ref, out_ref):
    # thr_ref : SMEM f32[1] threshold (whole array, untiled across the grid)
    # loss_ref / out_ref : VMEM (block_rows, 128) tiles in the caller's dtype
    x = loss_ref[...].astype(jnp.float32)          # in-register upcast -> f32 compare semantics
    out_ref[...] = (x < thr_ref[0]).astype(out_ref.dtype)


# ------------------------ fused per-step device work ----------------------- #
def _build_step_fns(shape, dtype, vals_len, keep_q):
    """Per-(shape, dtype) fused step functions (one XLA dispatch each):
      step(loss, thr, vals, start)      -> (mask, new_vals, new_start)
      step_recompute(loss, vals, start) -> (mask, new_vals, new_start, thr)
    """
    dtype = jnp.dtype(dtype)
    n = int(np.prod(shape)) if len(shape) else 1
    sub = _sublane_multiple(dtype)
    max_block_rows = max(sub, (_TILE_BYTES // (_LANES * dtype.itemsize)) // sub * sub)
    rows = _cdiv(n, _LANES)
    block_rows, num_blocks, padded_rows = _choose_blocking(rows, sub, max_block_rows)
    aligned = (n == rows * _LANES) and (padded_rows == rows)
    padded_elems = padded_rows * _LANES

    call = pl.pallas_call(
        _mask_kernel,
        out_shape=jax.ShapeDtypeStruct((padded_rows, _LANES), dtype),
        grid=(num_blocks,),
        in_specs=[
            pl.BlockSpec(memory_space=pltpu.MemorySpace.SMEM),        # threshold scalar
            pl.BlockSpec((block_rows, _LANES), lambda i: (i, 0)),     # loss row tiles
        ],
        out_specs=pl.BlockSpec((block_rows, _LANES), lambda i: (i, 0)),
        compiler_params=pltpu.CompilerParams(
            dimension_semantics=("parallel",)),  # shard row tiles across TCs (v7x)
    )

    def _mask(loss, thr):
        flat = jnp.ravel(loss)
        if aligned:
            x = flat.reshape(padded_rows, _LANES)                     # metadata-only
        else:
            x = jnp.pad(flat, (0, padded_elems - n)).reshape(padded_rows, _LANES)
        m = call(thr.reshape(1).astype(jnp.float32), x)
        if aligned:
            return m.reshape(shape)
        return m.reshape(-1)[:n].reshape(shape)

    def _write(loss, vals, start):
        # Warm-up fill and ring write coincide (start == count - n during
        # warm-up and never wraps there), so one modular scatter covers both.
        flat = jnp.ravel(loss).astype(jnp.float32)
        idx = (start + jnp.arange(n, dtype=jnp.int32)) % vals_len
        new_vals = vals.at[idx].set(flat)
        new_start = ((start + n) % vals_len).astype(jnp.int32)
        return new_vals, new_start

    @jax.jit
    def step(loss, thr, vals, start):
        new_vals, new_start = _write(loss, vals, start)
        return _mask(loss, thr), new_vals, new_start

    @jax.jit
    def step_recompute(loss, vals, start):
        new_vals, new_start = _write(loss, vals, start)
        thr = jnp.percentile(new_vals, keep_q).astype(jnp.float32)
        return _mask(loss, thr), new_vals, new_start, thr

    return step, step_recompute


# --------------------------- LossDropper module ---------------------------- #
class LossDropper:
    """JAX/Pallas port of the PyTorch LossDropper.

    Per-call mask computation runs in the Pallas kernel above; the ring buffer
    of recent losses, the write cursor and the percentile cutoff live on
    device and are updated in the same fused dispatch as the mask.  Only plain
    Python int counters remain on the host."""

    def __init__(self, dropc=0.4, min_count=10000, recompute=10000, verbose=True):
        self.keepc = 1.0 - dropc
        self.count = 0
        self.min_count = min_count
        self.recompute = recompute
        self.last_computed = 0
        self.percentile_val = 100000000.0
        self.cur_idx = 0
        self.verbose = verbose

        self._vals_len = int(recompute)
        self.vals = jnp.zeros(self._vals_len, dtype=jnp.float32)      # device ring buffer
        self._start_dev = jnp.zeros((), jnp.int32)                    # device write cursor
        self.threshold_dev = jnp.asarray(100000000.0, jnp.float32)    # current cutoff (device)
        self._inf_thr = jnp.asarray(jnp.inf, jnp.float32)             # cached warm-up cutoff
        self._step_fns = {}  # (shape, dtype) -> (step, step_recompute)

    def _get_step_fns(self, loss):
        key = (tuple(loss.shape), str(loss.dtype))
        fns = self._step_fns.get(key)
        if fns is None:
            fns = _build_step_fns(tuple(loss.shape), loss.dtype,
                                  self._vals_len, float(self.keepc * 100.0))
            self._step_fns[key] = fns
        return fns

    def __call__(self, loss):
        return self.forward(loss)

    def forward(self, loss):
        if loss is None:
            return loss
        n = int(np.prod(loss.shape)) if loss.ndim else 1
        # TODO(synk): the vectorized wraparound scatter assumes loss.numel() <=
        # recompute (always true in practice); a chunked fallback would be
        # needed to match the reference's sequential loop otherwise.
        assert n <= self._vals_len, "loss.numel() must be <= recompute"
        self.last_computed += n
        self.count += n

        step, step_recompute = self._get_step_fns(loss)
        warmup = self.count < self._vals_len

        if warmup or self.count < self.min_count:
            thr = self._inf_thr                 # reference returns (loss < inf)
        elif self.last_computed > self.recompute:
            # Ring write + percentile + mask fused into one dispatch; the
            # current loss is included in the percentile, as in the reference.
            mask, self.vals, self._start_dev, self.threshold_dev = step_recompute(
                loss, self.vals, self._start_dev)
            self.last_computed = 0
            self.cur_idx = (self.cur_idx + n) % self._vals_len
            # Keep the reference float API (rare sync: once per recompute window).
            self.percentile_val = float(jax.device_get(self.threshold_dev))
            if self.verbose:
                print('Using cutoff', self.percentile_val)
            return mask
        else:
            thr = self.threshold_dev

        mask, self.vals, self._start_dev = step(loss, thr, self.vals, self._start_dev)
        if warmup:
            self.cur_idx += n                   # reference does not wrap during warm-up
        else:
            self.cur_idx = (self.cur_idx + n) % self._vals_len
        return mask


# --------------------------------- main ------------------------------------ #
if __name__ == "__main__":
    key = jax.random.PRNGKey(0)
    seq = 8

    # min_count = recompute = 2*seq so three steps exercise all three threshold
    # paths: warm-up (+inf), initial 1e8 cutoff, recomputed percentile cutoff.
    dropper = LossDropper(dropc=0.4, min_count=2 * seq, recompute=2 * seq, verbose=False)

    losses, masks = [], []
    for _ in range(3):
        key, sub = jax.random.split(key)
        loss = jax.random.uniform(sub, (seq,), dtype=jnp.float32)
        losses.append(np.asarray(jax.device_get(loss)))
        mask = dropper(loss)
        masks.append(np.asarray(jax.block_until_ready(mask)))

    # Thresholds the module actually used at each step.
    thr_used = [np.inf, 1.0e8, dropper.percentile_val]
    for loss_np, mask_np, thr in zip(losses, masks, thr_used):
        ref = (loss_np < thr).astype(np.float32)
        assert mask_np.shape == ref.shape and mask_np.dtype == ref.dtype
        np.testing.assert_array_equal(mask_np, ref)

    # The recomputed cutoff must match numpy's percentile over the ring buffer
    # contents at that point ([step3 losses, step2 losses]).
    ring_ref = np.concatenate([losses[2], losses[1]])
    np_thr = float(np.percentile(ring_ref, dropper.keepc * 100.0))
    assert abs(thr_used[2] - np_thr) <= 1e-4 * max(1.0, abs(np_thr)), (thr_used[2], np_thr)

    # Padded / tail path: non-multiple-of-128 length, warm-up threshold.
    dropper2 = LossDropper(dropc=0.4, min_count=1000, recompute=1000, verbose=False)
    key, sub = jax.random.split(key)
    loss2 = jax.random.uniform(sub, (200,), dtype=jnp.float32)
    mask2 = np.asarray(jax.block_until_ready(dropper2(loss2)))
    np.testing.assert_array_equal(mask2, np.ones((200,), np.float32))

    # Aligned fast path + caller dtype preserved: bf16 (16, 128) slab, no pad/slice,
    # kernel emits the mask directly in bfloat16.
    dropper3 = LossDropper(dropc=0.4, min_count=100000, recompute=100000, verbose=False)
    key, sub = jax.random.split(key)
    loss3 = jax.random.uniform(sub, (16, 128), dtype=jnp.bfloat16)
    mask3 = jax.block_until_ready(dropper3(loss3))
    assert mask3.shape == (16, 128) and mask3.dtype == jnp.bfloat16
    np.testing.assert_array_equal(np.asarray(mask3, np.float32),
                                  np.ones((16, 128), np.float32))

    print("KERNEL_OK")
</pallas_src>

<mosaic_0001>
module attributes {stable_mosaic.version = 11 : i64} {
  func.func @_mask_kernel(%arg0: i32, %arg1: memref<1xf32, #tpu.memory_space<smem>>, %arg2: memref<8x128xf32, #tpu.memory_space<vmem>>, %arg3: memref<8x128xf32, #tpu.memory_space<vmem>>) attributes {dimension_semantics = [#tpu.dimension_semantics<parallel>], iteration_bounds = array<i64: 1>, scalar_prefetch = 0 : i64, scratch_operands = 0 : i64, tpu.core_type = #tpu.core_type<tc>, window_params = [{transform_indices = @transform_0, window_bounds = array<i64: 1>}, {transform_indices = @transform_1, window_bounds = array<i64: 8, 128>}, {transform_indices = @transform_2, window_bounds = array<i64: 8, 128>}]} {
    %c0 = arith.constant 0 : index
    %c0_0 = arith.constant 0 : index
    %0 = vector.load %arg2[%c0, %c0_0] : memref<8x128xf32, #tpu.memory_space<vmem>>, vector<8x128xf32>
    %c0_1 = arith.constant 0 : index
    %1 = memref.load %arg1[%c0_1] : memref<1xf32, #tpu.memory_space<smem>>
    %2 = vector.broadcast %1 : f32 to vector<8x128xf32>
    %3 = arith.cmpf olt, %0, %2 : vector<8x128xf32>
    %4 = arith.extui %3 : vector<8x128xi1> to vector<8x128xi32>
    %5 = arith.sitofp %4 : vector<8x128xi32> to vector<8x128xf32>
    %c0_2 = arith.constant 0 : index
    %c0_3 = arith.constant 0 : index
    %6 = vector.load %arg3[%c0_2, %c0_3] : memref<8x128xf32, #tpu.memory_space<vmem>>, vector<8x128xf32>
    tpu.vector_store %arg3[%c0_2, %c0_3], %5 {strides = array<i32>} : memref<8x128xf32, #tpu.memory_space<vmem>>, vector<8x128xf32>,
    return
  }
  func.func @transform_0(%arg0: i32) -> i32 {
    %c0_i32 = arith.constant 0 : i32
    %c0_i32_0 = arith.constant 0 : i32
    return %c0_i32 : i32
  }
  func.func @transform_1(%arg0: i32) -> (i32, i32) {
    %c0_i32 = arith.constant 0 : i32
    %c0_i32_0 = arith.constant 0 : i32
    return %arg0, %c0_i32 : i32, i32
  }
  func.func @transform_2(%arg0: i32) -> (i32, i32) {
    %c0_i32 = arith.constant 0 : i32
    %c0_i32_0 = arith.constant 0 : i32
    return %arg0, %c0_i32 : i32, i32
  }
}

</mosaic_0001>

<llo_original>
// kernel: step.1
$region0: #{step.1}
  #allocation0 [shape = 'u32[]', space=smem, size = 0x4, offset = 0x4, fixed_abs, tag = 'smem constant byte address 0x4 - core index']
  #allocation1 [shape = 'u32[72,128]{1,0:T(1,128)}', space=vmem, size = 0x9000, scoped, tag = 'internal scratch']
  #allocation2 [shape = 'f32[1]{0:T(128)S(6)}', space=smem, size = 0x200, scoped, tag = 'scoped memory for step.1']
  %s0 = inlined_call_operand.<no memory space> [shape: f32[1], index: 0, kind: input, shape index: {}]
  %s1 = inlined_call_operand.vmem [shape: f32[8,128], index: 1, kind: input, shape index: {}]
  %s2 = inlined_call_operand.vmem [shape: f32[8,128], index: 2, kind: output, shape index: {}]
  %s3 = sld [smem:[#allocation0]]
  $region18: #{step.1} parent=0
    _
  %s5 = ssub.s32 1, %s3
  %s6 = scalar_select 0, %s5, %s3
  %7 = sst [smem:[#allocation2]] %s0
  // Predicated region
  $region2: #{step.1} parent=0 // pred_check
    _
  $region3: #{step.1} parent=0 // pred_check_branch
    %9 = sbr.rel (0) target = $region5
  $region4: #{step.1} parent=0 // pred_region
    _
  $region5: #{step.1} parent=0 // pred_fallthru
    _
  // Predicated region
  $region6: #{step.1} parent=0 // pred_check
    _
  $region7: #{step.1} parent=0 // pred_check_branch
    %11 = sbr.rel (0) target = $region9
  $region8: #{step.1} parent=0 // pred_region
    _
  $region9: #{step.1} parent=0 // pred_fallthru
    _
  %v12 = vld [vmem:[%s1] sm:$0xff]
  %s13 = sld [smem:[#allocation2]]
  %v14 = vstv %s13
  %vm15 = vcmp.lt.f32.partialorder %v12, %v14
  %v16 = vsel %vm15, 1, 0
  %v17 = vcvt.s32.f32 %v16
  %18 = vst [vmem:[%s2] sm:$0xff] %v17
  // Predicated region
  $region10: #{step.1} parent=0 // pred_check
    _
  $region11: #{step.1} parent=0 // pred_check_branch
    %20 = sbr.rel (0) target = $region13
  $region12: #{step.1} parent=0 // pred_region
    _
  $region13: #{step.1} parent=0 // pred_fallthru
    _
  // Predicated region
  $region14: #{step.1} parent=0 // pred_check
    _
  $region15: #{step.1} parent=0 // pred_check_branch
    %22 = sbr.rel (0) target = $region17
  $region16: #{step.1} parent=0 // pred_region
    _
  $region17: #{step.1} parent=0 // pred_fallthru
    _

</llo_original>
